<compile_context>
chip_gen: v6e
topology: v6e:2x2x1
jax: 0.10.0
libtpu: 0.0.40
codegen_flags: <defaults>
</compile_context>

<pallas_src>
import jax
import jax.numpy as jnp
from jax import lax
from jax.experimental import pallas as pl
from jax.experimental.pallas import tpu as pltpu

LANES = 128


def _make_minus_sum_kernel(rows, tm, kb, needs_mask):
    """Builds the reduction kernel for a (rows, 128) slab tiled as (tm, 128)."""

    def kernel(x_ref, o_ref, acc_ref):
        k = pl.program_id(1)

        @pl.when(k == 0)
        def _():
            acc_ref[...] = jnp.zeros_like(acc_ref)

        x = x_ref[...].astype(jnp.float32)            # (tm, 128)
        if needs_mask:
            # Only the globally-last block is partial; zero out-of-range rows.
            blk = pl.program_id(0) * kb + k
            row_ids = blk * tm + lax.broadcasted_iota(jnp.int32, x.shape, 0)
            x = jnp.where(row_ids < rows, x, 0.0)

        # Pure-VPU accumulate: fold (tm//8) sub-slabs into the (8, 128) acc.
        # Reshape is along 8-row boundaries, so it is layout-free.
        acc_ref[...] += x.reshape(-1, 8, LANES).sum(axis=0)

        # Keep the resident output block up to date (one aligned vreg store).
        o_ref[...] = -acc_ref[...]

    return kernel


def minus_loss(act: jax.Array) -> jax.Array:
    """Computes -sum(act) with the reduction executed in a Pallas TPU kernel."""
    total = act.size
    dtype = act.dtype
    itemsize = jnp.dtype(dtype).itemsize
    # Sublane packing: f32 -> 8, bf16/f16 -> 16, int8/fp8 -> 32.
    min_sub = max(8, 32 // itemsize)

    flat = act.reshape(-1)
    pad = (-total) % LANES
    if pad:
        # Rare ragged-lane fallback (zero padding is sum-neutral); costs one
        # extra copy of the tensor.  Lane-divisible inputs skip this entirely.
        flat = jnp.concatenate([flat, jnp.zeros((pad,), dtype=dtype)])
    rows = flat.size // LANES
    x2d = flat.reshape(rows, LANES)

    # Block rows: as large as reasonable (<= 1024), multiple of the sublane
    # packing, without exceeding what the input needs.
    tm = min(1024, rows)
    tm = max(min_sub, (tm // min_sub) * min_sub)

    total_blocks = pl.cdiv(rows, tm)
    # Split the block range across a leading "parallel" axis when it divides
    # evenly (lets v7x's two TensorCores each own half the reduction).
    num_parts = 2 if (total_blocks >= 2 and total_blocks % 2 == 0) else 1
    kb = total_blocks // num_parts
    needs_mask = (rows % tm) != 0

    kernel = _make_minus_sum_kernel(rows, tm, kb, needs_mask)

    out = pl.pallas_call(
        kernel,
        out_shape=jax.ShapeDtypeStruct((num_parts * 8, LANES), jnp.float32),
        grid_spec=pltpu.PrefetchScalarGridSpec(
            num_scalar_prefetch=0,
            grid=(num_parts, kb),
            in_specs=[pl.BlockSpec((tm, LANES), lambda p, k: (p * kb + k, 0))],
            out_specs=pl.BlockSpec((8, LANES), lambda p, k: (p, 0)),
            scratch_shapes=[pltpu.VMEM((8, LANES), jnp.float32)],
        ),
        compiler_params=pltpu.CompilerParams(
            dimension_semantics=("parallel", "arbitrary"),
        ),
        cost_estimate=pl.CostEstimate(
            flops=total, transcendentals=0, bytes_accessed=total * itemsize
        ),
    )(x2d)

    # Tiny final cross-lane/sublane reduce of the negated partials in plain
    # JAX; matches torch's 0-dim -sum(act) (same dtype as the input).
    return jnp.sum(out).astype(dtype)


if __name__ == "__main__":
    key = jax.random.PRNGKey(0)
    # Small NCHW activation tensor: batch=2, channels=4, spatial=16x16.
    act = jax.random.normal(key, (2, 4, 16, 16), dtype=jnp.float32)

    result = minus_loss(act)
    result = jax.block_until_ready(result)

    # Sanity check against plain-JAX reference.
    ref = -jnp.sum(act)
    assert jnp.allclose(result, ref, rtol=1e-5, atol=1e-5), (result, ref)

    print("KERNEL_OK")
</pallas_src>

<mosaic_0001>
module attributes {stable_mosaic.version = 11 : i64} {
  func.func @kernel(%arg0: i32, %arg1: i32, %arg2: memref<16x128xf32, #tpu.memory_space<vmem>>, %arg3: memref<8x128xf32, #tpu.memory_space<vmem>>, %arg4: memref<8x128xf32, #tpu.memory_space<vmem>>) attributes {dimension_semantics = [#tpu.dimension_semantics<parallel>, #tpu.dimension_semantics<arbitrary>], iteration_bounds = array<i64: 1, 1>, scalar_prefetch = 0 : i64, scratch_operands = 1 : i64, tpu.core_type = #tpu.core_type<tc>, window_params = [{transform_indices = @transform_0, window_bounds = array<i64: 16, 128>}, {transform_indices = @transform_1, window_bounds = array<i64: 8, 128>}]} {
    %c0_i32 = arith.constant 0 : i32
    %0 = arith.cmpi eq, %arg1, %c0_i32 : i32
    %1 = arith.extui %0 : i1 to i32
    %c0_i32_0 = arith.constant 0 : i32
    %2 = arith.cmpi ne, %1, %c0_i32_0 : i32
    scf.if %2 {
      %cst_11 = arith.constant 0.000000e+00 : f32
      %13 = vector.broadcast %cst_11 : f32 to vector<8x128xf32>
      %c0_12 = arith.constant 0 : index
      %c0_13 = arith.constant 0 : index
      %14 = vector.load %arg4[%c0_12, %c0_13] : memref<8x128xf32, #tpu.memory_space<vmem>>, vector<8x128xf32>
      tpu.vector_store %arg4[%c0_12, %c0_13], %13 {strides = array<i32>} : memref<8x128xf32, #tpu.memory_space<vmem>>, vector<8x128xf32>,
    } else {
    }
    %c0 = arith.constant 0 : index
    %c0_1 = arith.constant 0 : index
    %3 = vector.load %arg2[%c0, %c0_1] : memref<16x128xf32, #tpu.memory_space<vmem>>, vector<16x128xf32>
    %c0_2 = arith.constant 0 : index
    %c0_3 = arith.constant 0 : index
    %4 = vector.load %arg4[%c0_2, %c0_3] : memref<8x128xf32, #tpu.memory_space<vmem>>, vector<8x128xf32>
    %5 = vector.shape_cast %3 : vector<16x128xf32> to vector<2x8x128xf32>
    %cst = arith.constant dense<0.000000e+00> : vector<8x128xf32>
    %6 = vector.multi_reduction <add>, %5, %cst [0] : vector<2x8x128xf32> to vector<8x128xf32>
    %7 = arith.addf %4, %6 : vector<8x128xf32>
    %c0_4 = arith.constant 0 : index
    %c0_5 = arith.constant 0 : index
    %8 = vector.load %arg4[%c0_4, %c0_5] : memref<8x128xf32, #tpu.memory_space<vmem>>, vector<8x128xf32>
    tpu.vector_store %arg4[%c0_4, %c0_5], %7 {strides = array<i32>} : memref<8x128xf32, #tpu.memory_space<vmem>>, vector<8x128xf32>,
    %c0_6 = arith.constant 0 : index
    %c0_7 = arith.constant 0 : index
    %9 = vector.load %arg4[%c0_6, %c0_7] : memref<8x128xf32, #tpu.memory_space<vmem>>, vector<8x128xf32>
    %cst_8 = arith.constant 0.000000e+00 : f32
    %10 = vector.broadcast %cst_8 : f32 to vector<8x128xf32>
    %11 = arith.subf %10, %9 : vector<8x128xf32>
    %c0_9 = arith.constant 0 : index
    %c0_10 = arith.constant 0 : index
    %12 = vector.load %arg3[%c0_9, %c0_10] : memref<8x128xf32, #tpu.memory_space<vmem>>, vector<8x128xf32>
    tpu.vector_store %arg3[%c0_9, %c0_10], %11 {strides = array<i32>} : memref<8x128xf32, #tpu.memory_space<vmem>>, vector<8x128xf32>,
    return
  }
  func.func @transform_0(%arg0: i32, %arg1: i32) -> (i32, i32) {
    %c1_i32 = arith.constant 1 : i32
    %0 = arith.muli %arg0, %c1_i32 : i32
    %1 = arith.addi %0, %arg1 : i32
    %c0_i32 = arith.constant 0 : i32
    %c0_i32_0 = arith.constant 0 : i32
    return %1, %c0_i32 : i32, i32
  }
  func.func @transform_1(%arg0: i32, %arg1: i32) -> (i32, i32) {
    %c0_i32 = arith.constant 0 : i32
    %c0_i32_0 = arith.constant 0 : i32
    return %arg0, %c0_i32 : i32, i32
  }
}

</mosaic_0001>

<llo_original>
// kernel: tpu_custom_call.1
$region0: #{tpu_custom_call.1}
  #allocation0 [shape = 'u32[]', space=smem, size = 0x4, offset = 0x4, fixed_abs, tag = 'smem constant byte address 0x4 - core index']
  #allocation1 [shape = 'u32[144,128]{1,0:T(1,128)}', space=vmem, size = 0x12000, scoped, tag = 'internal scratch']
  #allocation2 [shape = 'f32[8,128]{1,0:T(8,128)}', space=vmem, size = 0x1000, scoped, tag = 'scratch operand']
  %s0 = inlined_call_operand.hbm [shape: f32[16,128], index: 0, kind: input, shape index: {}]
  %s1 = inlined_call_operand.hbm [shape: f32[8,128], index: 1, kind: output, shape index: {}]
  %s2 = sld [smem:[#allocation0]]
  $region22: #{tpu_custom_call.1} parent=0
    _
  %s4 = ssub.s32 1, %s2
  %s5 = scalar_select 0, %s4, %s2
  $region1: #{tpu_custom_call.1} parent=0
    #allocation3 [shape = 'u8[8192]{0}', space=vmem, size = 0x2000, scoped, tag = 'input window, operand 0, single buffered']
    #allocation4 [shape = 's32[1]{0}', space=sflag, size = 0x4, scoped, tag = 'scoped memory for tpu_custom_call.1']
    #allocation5 [shape = 's32[1]{0}', space=sflag, size = 0x4, scoped, tag = 'scoped memory for tpu_custom_call.1']
    #allocation6 [shape = 'u8[4096]{0}', space=vmem, size = 0x1000, scoped, tag = 'output window, operand 0, single buffered']
    %6 = vsyncpa [#allocation4], 0
    %7 = vsyncpa [#allocation5], 0
    // Predicated region
    $region2: #{tpu_custom_call.1} parent=1 // pred_check
      _
    $region3: #{tpu_custom_call.1} parent=1 // pred_check_branch
      %9 = sbr.rel (0) target = $region5
    $region4: #{tpu_custom_call.1} parent=1 // pred_region
      %s10 = sadd.s32 0, 0
      %s11 = smul.u32 2, %s10
      %s13 = ssub.s32 256, 256
      %14 = vsyncadd [#allocation4], %s13
      %s15 = smul.addr %s11, 128
      %s16 = scalar_lea.hbm %s0, %s15
      %s17 = sshll.u32 [#allocation3], 4
      %s18 = int_to_ptr.vmem [resolvable:$true] %s17
      %23 = dma.hbm_to_vmem [thread:$0]  %s16, 256, %s18, [#allocation4], 128, 128, 8
    $region5: #{tpu_custom_call.1} parent=1 // pred_fallthru
      _
    // Predicated region
    $region6: #{tpu_custom_call.1} parent=1 // pred_check
      _
    $region7: #{tpu_custom_call.1} parent=1 // pred_check_branch
      %25 = sbr.rel (0) target = $region9
    $region8: #{tpu_custom_call.1} parent=1 // pred_region
      %26 = dma.done [#allocation4], 256
    $region9: #{tpu_custom_call.1} parent=1 // pred_fallthru
      _
    %s27 = sadd.s32 0, 0
    %s28 = smul.u32 2, %s27
    %p29 = scmp.eq.s32.totalorder 0, 0
    // Predicated region
    $region10: #{tpu_custom_call.1} parent=1 // pred_check
      %p30 = pneg %p29
    $region11: #{tpu_custom_call.1} parent=1 // pred_check_branch
      %32 = sbr.rel (%p30) target = $region13
    $region12: #{tpu_custom_call.1} parent=1 // pred_region
      %33 = vst [vmem:[#allocation2] sm:$0xff] 0.0
    $region13: #{tpu_custom_call.1} parent=1 // pred_fallthru
      _
    %v34 = vld [vmem:[#allocation3] sm:$0xff]
    %v35 = vld [vmem:[#allocation3 + $0x8] sm:$0xff]
    %v36 = vld [vmem:[#allocation2] sm:$0xff]
    %v37 = vadd.f32 %v34, %v35
    %v38 = vadd.f32 %v36, %v37
    %39 = vst [vmem:[#allocation2] sm:$0xff] %v38
    %v40 = vld [vmem:[#allocation2] sm:$0xff]
    %v41 = vsub.f32 0.0, %v40
    %42 = vst [vmem:[#allocation6] sm:$0xff] %v41
    // Predicated region
    $region14: #{tpu_custom_call.1} parent=1 // pred_check
      _
    $region15: #{tpu_custom_call.1} parent=1 // pred_check_branch
      %44 = sbr.rel (0) target = $region17
    $region16: #{tpu_custom_call.1} parent=1 // pred_region
      %s46 = ssub.s32 128, 128
      %47 = vsyncadd [#allocation5], %s46
      %s49 = sshll.u32 [#allocation6], 4
      %s50 = int_to_ptr.vmem [resolvable:$true] %s49
      %52 = dma.vmem_to_hbm [thread:$0]  %s50, 128, %s1, [#allocation5]
    $region17: #{tpu_custom_call.1} parent=1 // pred_fallthru
      _
    // Predicated region
    $region18: #{tpu_custom_call.1} parent=1 // pred_check
      _
    $region19: #{tpu_custom_call.1} parent=1 // pred_check_branch
      %54 = sbr.rel (0) target = $region21
    $region20: #{tpu_custom_call.1} parent=1 // pred_region
      %55 = dma.done [#allocation5], 128
    $region21: #{tpu_custom_call.1} parent=1 // pred_fallthru
      _
    %56 = vsyncpa [#allocation4], 1
    %57 = vsyncpa [#allocation5], 1

</llo_original>
